<compile_context>
chip_gen: v7x
topology: tpu7x:2x2x1
jax: 0.10.0
libtpu: 0.0.40
codegen_flags: <defaults>
</compile_context>

<pallas_src>
import functools

import jax
import jax.numpy as jnp
from jax.experimental import pallas as pl
from jax.experimental.pallas import tpu as pltpu


# ----------------------------- helpers ---------------------------------------

def _round_up(x, m):
    return ((x + m - 1) // m) * m


def _sublane_pack(dtype):
    """Rows per sublane-pack for the dtype (8 f32, 16 bf16, 32 int8/fp8)."""
    itemsize = jnp.dtype(dtype).itemsize
    return {4: 8, 2: 16, 1: 32}.get(itemsize, 8)


def _largest_aligned_divisor(dim, max_tile, align):
    """Largest t <= max_tile with t % align == 0 and dim % t == 0, else None."""
    t = (min(max_tile, dim) // align) * align
    while t >= align:
        if dim % t == 0:
            return t
        t -= align
    return None


def _vmem_capacity_bytes():
    try:
        info = pltpu.get_tpu_info()
        cap = getattr(info, "vmem_capacity_bytes", None)
        if cap:
            return int(cap)
    except Exception:
        pass
    return 64 * 1024 * 1024  # conservative fallback (v7x per-TC VMEM)


# ----------------------------- kernels ----------------------------------------
# Single-K-step (common) case: fully fused, no scratch, direct store.

def _adaln_cond_kernel_fused(x_ref, w2_ref, sc_ref, wc_ref, bc_ref, o_ref):
    out = jnp.dot(x_ref[...], w2_ref[...], preferred_element_type=jnp.float32)
    gate = jax.nn.sigmoid(
        jnp.dot(sc_ref[...], wc_ref[...], preferred_element_type=jnp.float32)
        + bc_ref[...]
    )
    o_ref[...] = (gate * out).astype(o_ref.dtype)


def _adaln_nocond_kernel_fused(x_ref, w2_ref, o_ref):
    o_ref[...] = jnp.dot(
        x_ref[...], w2_ref[...], preferred_element_type=jnp.float32
    ).astype(o_ref.dtype)


# K-tiled case (large c_in): f32 accumulator; gate computed at k==0 so the
# skinny cond matmul + sigmoid overlap with the K loop instead of the tail.

def _adaln_cond_kernel_ktiled(x_ref, w2_ref, sc_ref, wc_ref, bc_ref, o_ref,
                              acc_ref, gate_ref):
    k = pl.program_id(2)

    @pl.when(k == 0)
    def _():
        acc_ref[...] = jnp.zeros_like(acc_ref)
        gate_ref[...] = jax.nn.sigmoid(
            jnp.dot(sc_ref[...], wc_ref[...], preferred_element_type=jnp.float32)
            + bc_ref[...]
        )

    acc_ref[...] += jnp.dot(
        x_ref[...], w2_ref[...], preferred_element_type=jnp.float32
    )

    @pl.when(k == pl.num_programs(2) - 1)
    def _():
        o_ref[...] = (gate_ref[...] * acc_ref[...]).astype(o_ref.dtype)


def _adaln_nocond_kernel_ktiled(x_ref, w2_ref, o_ref, acc_ref):
    k = pl.program_id(2)

    @pl.when(k == 0)
    def _():
        acc_ref[...] = jnp.zeros_like(acc_ref)

    acc_ref[...] += jnp.dot(
        x_ref[...], w2_ref[...], preferred_element_type=jnp.float32
    )

    @pl.when(k == pl.num_programs(2) - 1)
    def _():
        o_ref[...] = acc_ref[...].astype(o_ref.dtype)


# ----------------------------- wrapper ----------------------------------------

@functools.partial(jax.jit, static_argnames=("k_untiled_max", "k_tile_max"))
def adaln_zero_forward(x, w2_t, single_cond=None, wc_t=None, bc=None, *,
                       k_untiled_max=2048, k_tile_max=2048):
    """AdaLNZero forward.

    x:           [..., c_in]
    w2_t:        [c_in, c_out]            (transition2.weight.T)
    single_cond: [..., c_single_cond] or None
    wc_t:        [c_single_cond, c_out]   (adaptive_zero_cond.weight.T)
    bc:          [c_out]                  (adaptive_zero_cond.bias)
    returns:     [..., c_out]
    """
    lead_shape = x.shape[:-1]
    c_in = x.shape[-1]
    c_out = w2_t.shape[-1]

    m = 1
    for d in lead_shape:
        m *= d
    x2 = x.reshape(m, c_in)

    # --- generation-aware budgets (static, trace-time) ------------------------
    vmem_cap = _vmem_capacity_bytes()
    big_vmem = vmem_cap >= 100 * 1024 * 1024        # v5e/v6e: 128 MiB, v7x: 64 MiB
    vmem_limit = (96 if big_vmem else 40) * 1024 * 1024
    rt_target = 512 if big_vmem else 256
    nt_target = 1024 if big_vmem else 512

    # --- tile selection --------------------------------------------------------
    # Rows: big tile for MXU occupancy, rounded to the dtype's sublane pack;
    # ragged M handled with cdiv + masked partial blocks.
    pack = _sublane_pack(x.dtype)
    rt = max(pack, min(rt_target, _round_up(m, pack)))
    # N (c_out): fixed lane-dense tile; last block may be partial (masked write).
    nt = c_out if c_out <= nt_target else nt_target
    # K (c_in): only tile when large; pick an exact divisor that is a multiple
    # of 256 (then 128) so no K-tail masking is needed and the 256x256 MXUs on
    # v6e/v7x see full-width tiles.  Falls back to untiled K if no divisor.
    if c_in <= k_untiled_max:
        kt = c_in
    else:
        kt = (_largest_aligned_divisor(c_in, k_tile_max, 256)
              or _largest_aligned_divisor(c_in, k_tile_max, 128)
              or c_in)
    k_steps = c_in // kt

    out_shape = jax.ShapeDtypeStruct((m, c_out), x.dtype)
    grid_rows = pl.cdiv(m, rt)
    grid_n = pl.cdiv(c_out, nt)

    if k_steps == 1:
        grid = (grid_rows, grid_n)
        dims = ("parallel", "parallel")
    else:
        grid = (grid_rows, grid_n, k_steps)
        dims = ("parallel", "parallel", "arbitrary")

    cparams = pltpu.CompilerParams(
        dimension_semantics=dims,
        vmem_limit_bytes=vmem_limit,
    )

    if single_cond is not None:
        c_sc = single_cond.shape[-1]
        sc2 = single_cond.reshape(m, c_sc)
        bc2 = bc.reshape(1, c_out)
        if k_steps == 1:
            out = pl.pallas_call(
                _adaln_cond_kernel_fused,
                out_shape=out_shape,
                grid=grid,
                in_specs=[
                    pl.BlockSpec((rt, c_in), lambda i, j: (i, 0)),
                    pl.BlockSpec((c_in, nt), lambda i, j: (0, j)),
                    pl.BlockSpec((rt, c_sc), lambda i, j: (i, 0)),
                    pl.BlockSpec((c_sc, nt), lambda i, j: (0, j)),
                    pl.BlockSpec((1, nt), lambda i, j: (0, j)),
                ],
                out_specs=pl.BlockSpec((rt, nt), lambda i, j: (i, j)),
                compiler_params=cparams,
            )(x2, w2_t, sc2, wc_t, bc2)
        else:
            out = pl.pallas_call(
                _adaln_cond_kernel_ktiled,
                out_shape=out_shape,
                grid=grid,
                in_specs=[
                    pl.BlockSpec((rt, kt), lambda i, j, k: (i, k)),
                    pl.BlockSpec((kt, nt), lambda i, j, k: (k, j)),
                    pl.BlockSpec((rt, c_sc), lambda i, j, k: (i, 0)),
                    pl.BlockSpec((c_sc, nt), lambda i, j, k: (0, j)),
                    pl.BlockSpec((1, nt), lambda i, j, k: (0, j)),
                ],
                out_specs=pl.BlockSpec((rt, nt), lambda i, j, k: (i, j)),
                scratch_shapes=[pltpu.VMEM((rt, nt), jnp.float32),   # acc
                                pltpu.VMEM((rt, nt), jnp.float32)],  # gate
                compiler_params=cparams,
            )(x2, w2_t, sc2, wc_t, bc2)
    else:
        if k_steps == 1:
            out = pl.pallas_call(
                _adaln_nocond_kernel_fused,
                out_shape=out_shape,
                grid=grid,
                in_specs=[
                    pl.BlockSpec((rt, c_in), lambda i, j: (i, 0)),
                    pl.BlockSpec((c_in, nt), lambda i, j: (0, j)),
                ],
                out_specs=pl.BlockSpec((rt, nt), lambda i, j: (i, j)),
                compiler_params=cparams,
            )(x2, w2_t)
        else:
            out = pl.pallas_call(
                _adaln_nocond_kernel_ktiled,
                out_shape=out_shape,
                grid=grid,
                in_specs=[
                    pl.BlockSpec((rt, kt), lambda i, j, k: (i, k)),
                    pl.BlockSpec((kt, nt), lambda i, j, k: (k, j)),
                ],
                out_specs=pl.BlockSpec((rt, nt), lambda i, j, k: (i, j)),
                scratch_shapes=[pltpu.VMEM((rt, nt), jnp.float32)],
                compiler_params=cparams,
            )(x2, w2_t)

    return out.reshape(*lead_shape, c_out)


# ----------------------------- reference --------------------------------------

def adaln_zero_reference(x, w2_t, single_cond=None, wc_t=None, bc=None):
    out = jnp.einsum("...i,io->...o", x, w2_t)
    if single_cond is not None:
        cond = jnp.einsum("...i,io->...o", single_cond, wc_t) + bc
        out = jax.nn.sigmoid(cond) * out
    return out


# ----------------------------- main --------------------------------------------

if __name__ == "__main__":
    # Small shapes implied by the forward: x: [B, S, c_in], single_cond: [B, S, c_single_cond]
    B, S = 2, 8
    c_in, c_out, c_single_cond = 32, 32, 16

    key = jax.random.PRNGKey(0)
    kx, ksc, kw2, kwc, kbc = jax.random.split(key, 5)

    x = jax.random.normal(kx, (B, S, c_in), dtype=jnp.float32)
    single_cond = jax.random.normal(ksc, (B, S, c_single_cond), dtype=jnp.float32)

    # Deterministic parameter init (PyTorch Linear-style uniform bounds),
    # stored pre-transposed: [in, out].
    bound_w2 = 1.0 / jnp.sqrt(c_in)
    bound_wc = 1.0 / jnp.sqrt(c_single_cond)
    w2_t = jax.random.uniform(kw2, (c_in, c_out), jnp.float32, -bound_w2, bound_w2)
    wc_t = jax.random.uniform(kwc, (c_single_cond, c_out), jnp.float32, -bound_wc, bound_wc)
    bc = jax.random.uniform(kbc, (c_out,), jnp.float32, -bound_wc, bound_wc)

    # use_single_cond=True path (full module functionality, single-K fused kernel)
    out = adaln_zero_forward(x, w2_t, single_cond, wc_t, bc)
    out = jax.block_until_ready(out)
    ref = adaln_zero_reference(x, w2_t, single_cond, wc_t, bc)
    assert out.shape == (B, S, c_out)
    assert jnp.allclose(out, ref, atol=1e-5, rtol=1e-5)

    # use_single_cond=False path
    out2 = adaln_zero_forward(x, w2_t)
    out2 = jax.block_until_ready(out2)
    ref2 = adaln_zero_reference(x, w2_t)
    assert jnp.allclose(out2, ref2, atol=1e-5, rtol=1e-5)

    # Ragged-M path (row count not a multiple of the tile): masked partial blocks.
    Sr = 7  # m = 2*7 = 14 rows
    xr = jax.random.normal(kx, (B, Sr, c_in), dtype=jnp.float32)
    scr = jax.random.normal(ksc, (B, Sr, c_single_cond), dtype=jnp.float32)
    out3 = adaln_zero_forward(xr, w2_t, scr, wc_t, bc)
    out3 = jax.block_until_ready(out3)
    ref3 = adaln_zero_reference(xr, w2_t, scr, wc_t, bc)
    assert out3.shape == (B, Sr, c_out)
    assert jnp.allclose(out3, ref3, atol=1e-5, rtol=1e-5)

    # K-tiled accumulator path (exercised by forcing a small untiled-K limit):
    # c_in=256 with k_untiled_max=64 / k_tile_max=128 -> kt=128, 2 K steps.
    c_in_big = 256
    kx2, kw2b = jax.random.split(kx)
    xb = jax.random.normal(kx2, (B, S, c_in_big), dtype=jnp.float32)
    bound_b = 1.0 / jnp.sqrt(c_in_big)
    w2b_t = jax.random.uniform(kw2b, (c_in_big, c_out), jnp.float32, -bound_b, bound_b)
    out4 = adaln_zero_forward(xb, w2b_t, single_cond, wc_t, bc,
                              k_untiled_max=64, k_tile_max=128)
    out4 = jax.block_until_ready(out4)
    ref4 = adaln_zero_reference(xb, w2b_t, single_cond, wc_t, bc)
    assert out4.shape == (B, S, c_out)
    assert jnp.allclose(out4, ref4, atol=2e-3, rtol=2e-3)

    print("KERNEL_OK")
</pallas_src>

<mosaic_0001>
module attributes {stable_mosaic.version = 11 : i64} {
  func.func @_adaln_cond_kernel_fused(%arg0: i32, %arg1: i32, %arg2: memref<16x32xf32, #tpu.memory_space<vmem>>, %arg3: memref<32x32xf32, #tpu.memory_space<vmem>>, %arg4: memref<16x16xf32, #tpu.memory_space<vmem>>, %arg5: memref<16x32xf32, #tpu.memory_space<vmem>>, %arg6: memref<1x32xf32, #tpu.memory_space<vmem>>, %arg7: memref<16x32xf32, #tpu.memory_space<vmem>>) attributes {dimension_semantics = [#tpu.dimension_semantics<parallel>, #tpu.dimension_semantics<parallel>], iteration_bounds = array<i64: 1, 1>, scalar_prefetch = 0 : i64, scratch_operands = 0 : i64, tpu.core_type = #tpu.core_type<tc>, window_params = [{transform_indices = @transform_0, window_bounds = array<i64: 16, 32>}, {transform_indices = @transform_1, window_bounds = array<i64: 32, 32>}, {transform_indices = @transform_2, window_bounds = array<i64: 16, 16>}, {transform_indices = @transform_3, window_bounds = array<i64: 16, 32>}, {transform_indices = @transform_4, window_bounds = array<i64: 1, 32>}, {transform_indices = @transform_5, window_bounds = array<i64: 16, 32>}]} {
    %c0 = arith.constant 0 : index
    %c0_0 = arith.constant 0 : index
    %0 = vector.load %arg2[%c0, %c0_0] : memref<16x32xf32, #tpu.memory_space<vmem>>, vector<16x32xf32>
    %c0_1 = arith.constant 0 : index
    %c0_2 = arith.constant 0 : index
    %1 = vector.load %arg3[%c0_1, %c0_2] : memref<32x32xf32, #tpu.memory_space<vmem>>, vector<32x32xf32>
    %cst = arith.constant dense<0.000000e+00> : vector<16x32xf32>
    %2 = tpu.matmul %0, %1, %cst {dimension_numbers = #tpu.dot_dimension_numbers<[1], [0], [0], [1], [0, 0, 1, 1], [], []>} : vector<16x32xf32>, vector<32x32xf32>, vector<16x32xf32> -> vector<16x32xf32>
    %c0_3 = arith.constant 0 : index
    %c0_4 = arith.constant 0 : index
    %3 = vector.load %arg4[%c0_3, %c0_4] : memref<16x16xf32, #tpu.memory_space<vmem>>, vector<16x16xf32>
    %c0_5 = arith.constant 0 : index
    %c0_6 = arith.constant 0 : index
    %4 = vector.load %arg5[%c0_5, %c0_6] : memref<16x32xf32, #tpu.memory_space<vmem>>, vector<16x32xf32>
    %cst_7 = arith.constant dense<0.000000e+00> : vector<16x32xf32>
    %5 = tpu.matmul %3, %4, %cst_7 {dimension_numbers = #tpu.dot_dimension_numbers<[1], [0], [0], [1], [0, 0, 1, 1], [], []>} : vector<16x16xf32>, vector<16x32xf32>, vector<16x32xf32> -> vector<16x32xf32>
    %c0_8 = arith.constant 0 : index
    %c0_9 = arith.constant 0 : index
    %6 = vector.load %arg6[%c0_8, %c0_9] : memref<1x32xf32, #tpu.memory_space<vmem>>, vector<1x32xf32>
    %7 = vector.broadcast %6 : vector<1x32xf32> to vector<16x32xf32>
    %8 = arith.addf %5, %7 : vector<16x32xf32>
    %9 = arith.negf %8 : vector<16x32xf32>
    %10 = math.exp %9 : vector<16x32xf32>
    %cst_10 = arith.constant 1.000000e+00 : f32
    %11 = vector.broadcast %cst_10 : f32 to vector<16x32xf32>
    %12 = arith.addf %11, %10 : vector<16x32xf32>
    %13 = arith.divf %11, %12 : vector<16x32xf32>
    %14 = arith.mulf %13, %2 : vector<16x32xf32>
    %c0_11 = arith.constant 0 : index
    %c0_12 = arith.constant 0 : index
    %15 = vector.load %arg7[%c0_11, %c0_12] : memref<16x32xf32, #tpu.memory_space<vmem>>, vector<16x32xf32>
    tpu.vector_store %arg7[%c0_11, %c0_12], %14 {strides = array<i32>} : memref<16x32xf32, #tpu.memory_space<vmem>>, vector<16x32xf32>,
    return
  }
  func.func @transform_0(%arg0: i32, %arg1: i32) -> (i32, i32) {
    %c0_i32 = arith.constant 0 : i32
    %c0_i32_0 = arith.constant 0 : i32
    return %arg0, %c0_i32 : i32, i32
  }
  func.func @transform_1(%arg0: i32, %arg1: i32) -> (i32, i32) {
    %c0_i32 = arith.constant 0 : i32
    %c0_i32_0 = arith.constant 0 : i32
    return %c0_i32, %arg1 : i32, i32
  }
  func.func @transform_2(%arg0: i32, %arg1: i32) -> (i32, i32) {
    %c0_i32 = arith.constant 0 : i32
    %c0_i32_0 = arith.constant 0 : i32
    return %arg0, %c0_i32 : i32, i32
  }
  func.func @transform_3(%arg0: i32, %arg1: i32) -> (i32, i32) {
    %c0_i32 = arith.constant 0 : i32
    %c0_i32_0 = arith.constant 0 : i32
    return %c0_i32, %arg1 : i32, i32
  }
  func.func @transform_4(%arg0: i32, %arg1: i32) -> (i32, i32) {
    %c0_i32 = arith.constant 0 : i32
    %c0_i32_0 = arith.constant 0 : i32
    return %c0_i32, %arg1 : i32, i32
  }
  func.func @transform_5(%arg0: i32, %arg1: i32) -> (i32, i32) {
    %c0_i32 = arith.constant 0 : i32
    return %arg0, %arg1 : i32, i32
  }
}

</mosaic_0001>

<llo_original>
// kernel: adaln_zero_forward.1
$region0: #{adaln_zero_forward.1}
  #allocation0 [shape = 'u32[]', space=smem, size = 0x4, offset = 0x4, fixed_abs, tag = 'smem constant byte address 0x4 - core index']
  #allocation1 [shape = 'u32[144,128]{1,0:T(1,128)}', space=vmem, size = 0x12000, scoped, tag = 'internal scratch']
  %s0 = inlined_call_operand.hbm [shape: f32[16,32], index: 0, kind: input, shape index: {}]
  %s1 = inlined_call_operand.hbm [shape: f32[32,32], index: 1, kind: input, shape index: {}]
  %s2 = inlined_call_operand.vmem [shape: f32[16,16], index: 2, kind: input, shape index: {}]
  %s3 = inlined_call_operand.hbm [shape: f32[16,32], index: 3, kind: input, shape index: {}]
  %s4 = inlined_call_operand.vmem [shape: f32[1,32], index: 4, kind: input, shape index: {}]
  %s5 = inlined_call_operand.hbm [shape: f32[16,32], index: 5, kind: output, shape index: {}]
  %s6 = sld [smem:[#allocation0]]
  $region42: #{adaln_zero_forward.1} parent=0
    _
  %s8 = ssub.s32 1, %s6
  %s9 = scalar_select 0, %s8, %s6
  $region1: #{adaln_zero_forward.1} parent=0
    #allocation2 [shape = 'u8[8192]{0}', space=vmem, size = 0x2000, scoped, tag = 'input window, operand 0, single buffered']
    #allocation3 [shape = 's32[1]{0}', space=sflag, size = 0x4, scoped, tag = 'scoped memory for adaln_zero_forward.1']
    #allocation4 [shape = 's32[1]{0}', space=sflag, size = 0x4, scoped, tag = 'scoped memory for adaln_zero_forward.1']
    #allocation5 [shape = 'u8[16384]{0}', space=vmem, size = 0x4000, scoped, tag = 'input window, operand 1, single buffered']
    #allocation6 [shape = 's32[1]{0}', space=sflag, size = 0x4, scoped, tag = 'scoped memory for adaln_zero_forward.1']
    #allocation7 [shape = 'u8[8192]{0}', space=vmem, size = 0x2000, scoped, tag = 'input window, operand 3, single buffered']
    #allocation8 [shape = 'u8[8192]{0}', space=vmem, size = 0x2000, scoped, tag = 'output window, operand 0, single buffered']
    %10 = vsyncpa [#allocation3], 0
    %11 = vsyncpa [#allocation6], 0
    %12 = vsyncpa [#allocation4], 0
    // Predicated region
    $region2: #{adaln_zero_forward.1} parent=1 // pred_check
      _
    $region3: #{adaln_zero_forward.1} parent=1 // pred_check_branch
      %14 = sbr.rel (0) target = $region5
    $region4: #{adaln_zero_forward.1} parent=1 // pred_region
      %s16 = ssub.s32 256, 256
      %17 = vsyncadd [#allocation3], %s16
      %s18 = sshll.u32 [#allocation2], 4
      %s19 = int_to_ptr.vmem [resolvable:$true] %s18
      %24 = dma.hbm_to_vmem [thread:$0]  %s0, 256, %s19, [#allocation3], 128, 128, 8
    $region5: #{adaln_zero_forward.1} parent=1 // pred_fallthru
      _
    // Predicated region
    $region6: #{adaln_zero_forward.1} parent=1 // pred_check
      _
    $region7: #{adaln_zero_forward.1} parent=1 // pred_check_branch
      %26 = sbr.rel (0) target = $region9
    $region8: #{adaln_zero_forward.1} parent=1 // pred_region
      %s28 = ssub.s32 512, 512
      %29 = vsyncadd [#allocation6], %s28
      %s30 = sshll.u32 [#allocation5], 4
      %s31 = int_to_ptr.vmem [resolvable:$true] %s30
      %36 = dma.hbm_to_vmem [thread:$0]  %s1, 512, %s31, [#allocation6], 128, 128, 8
    $region9: #{adaln_zero_forward.1} parent=1 // pred_fallthru
      _
    // Predicated region
    $region10: #{adaln_zero_forward.1} parent=1 // pred_check
      _
    $region11: #{adaln_zero_forward.1} parent=1 // pred_check_branch
      %38 = sbr.rel (0) target = $region13
    $region12: #{adaln_zero_forward.1} parent=1 // pred_region
      _
    $region13: #{adaln_zero_forward.1} parent=1 // pred_fallthru
      _
    // Predicated region
    $region14: #{adaln_zero_forward.1} parent=1 // pred_check
      _
    $region15: #{adaln_zero_forward.1} parent=1 // pred_check_branch
      %40 = sbr.rel (0) target = $region17
    $region16: #{adaln_zero_forward.1} parent=1 // pred_region
      %s42 = ssub.s32 256, 256
      %43 = vsyncadd [#allocation6], %s42
      %s44 = sshll.u32 [#allocation7], 4
      %s45 = int_to_ptr.vmem [resolvable:$true] %s44
      %50 = dma.hbm_to_vmem [thread:$0]  %s3, 256, %s45, [#allocation6], 128, 128, 8
    $region17: #{adaln_zero_forward.1} parent=1 // pred_fallthru
      _
    // Predicated region
    $region18: #{adaln_zero_forward.1} parent=1 // pred_check
      _
    $region19: #{adaln_zero_forward.1} parent=1 // pred_check_branch
      %52 = sbr.rel (0) target = $region21
    $region20: #{adaln_zero_forward.1} parent=1 // pred_region
      _
    $region21: #{adaln_zero_forward.1} parent=1 // pred_fallthru
      _
    // Predicated region
    $region22: #{adaln_zero_forward.1} parent=1 // pred_check
      _
    $region23: #{adaln_zero_forward.1} parent=1 // pred_check_branch
      %54 = sbr.rel (0) target = $region25
    $region24: #{adaln_zero_forward.1} parent=1 // pred_region
      %55 = dma.done [#allocation3], 256
    $region25: #{adaln_zero_forward.1} parent=1 // pred_fallthru
      _
    // Predicated region
    $region26: #{adaln_zero_forward.1} parent=1 // pred_check
      _
    $region27: #{adaln_zero_forward.1} parent=1 // pred_check_branch
      %57 = sbr.rel (0) target = $region29
    $region28: #{adaln_zero_forward.1} parent=1 // pred_region
      %58 = dma.done [#allocation6], 512
    $region29: #{adaln_zero_forward.1} parent=1 // pred_fallthru
      _
    // Predicated region
    $region30: #{adaln_zero_forward.1} parent=1 // pred_check
      _
    $region31: #{adaln_zero_forward.1} parent=1 // pred_check_branch
      %60 = sbr.rel (0) target = $region33
    $region32: #{adaln_zero_forward.1} parent=1 // pred_region
      %61 = dma.done [#allocation6], 256
    $region33: #{adaln_zero_forward.1} parent=1 // pred_fallthru
      _
    %v62 = vld [vmem:[#allocation2] sm:$0xff]
    %v63 = vld [vmem:[#allocation2 + $0x8] sm:$0xff]
    %v64 = vld [vmem:[#allocation5] sm:$0xff]
    %v65 = vld [vmem:[#allocation5 + $0x8] sm:$0xff]
    %v66 = vld [vmem:[#allocation5 + $0x10] sm:$0xff]
    %v67 = vld [vmem:[#allocation5 + $0x18] sm:$0xff]
    %vm68 = vcmask 261120
    %v70 = vsel %vm68, %v62, 0
    %v73 = vsel %vm68, %v63, 0
    %75 = vmatprep.subr.mxu0 0.0
    %76 = vmatpush1.msra.mxu0 %v64
    %77 = vmatprep.subr.mxu0 0.0
    %78 = vmatpush1.msra.mxu0 %v65
    %79 = vmatprep.subr.mxu0 0.0
    %80 = vmatpush1.msra.mxu0 %v66
    %81 = vmatprep.subr.mxu0 0.0
    %82 = vmatpush1.msra.mxu0 %v67
    %83 = vmatprep.subr.mxu0 0.0
    %84 = vmatpush1.msra.mxu0 0.0
    %85 = vmatprep.subr.mxu0 0.0
    %86 = vmatpush1.msra.mxu0 0.0
    %87 = vmatprep.subr.mxu0 0.0
    %88 = vmatpush1.msra.mxu0 0.0
    %89 = vmatprep.subr.mxu0 0.0
    %90 = vmatpush1.msra.mxu0 0.0
    %91 = vmatprep.subr.mxu0 0.0
    %92 = vmatpush1.msra.mxu0 0.0
    %93 = vmatprep.subr.mxu0 0.0
    %94 = vmatpush1.msra.mxu0 0.0
    %95 = vmatprep.subr.mxu0 0.0
    %96 = vmatpush1.msra.mxu0 0.0
    %97 = vmatprep.subr.mxu0 0.0
    %98 = vmatpush1.msra.mxu0 0.0
    %99 = vmatprep.subr.mxu0 0.0
    %100 = vmatpush1.msra.mxu0 0.0
    %101 = vmatprep.subr.mxu0 0.0
    %102 = vmatpush1.msra.mxu0 0.0
    %103 = vmatprep.subr.mxu0 0.0
    %104 = vmatpush1.msra.mxu0 0.0
    %105 = vmatprep.subr.mxu0 0.0
    %106 = vmatpush1.msra.mxu0 0.0
    %107 = vmatprep.subr.mxu0 0.0
    %108 = vmatpush1.msra.mxu0 0.0
    %109 = vmatprep.subr.mxu0 0.0
    %110 = vmatpush1.msra.mxu0 0.0
    %111 = vmatprep.subr.mxu0 0.0
    %112 = vmatpush1.msra.mxu0 0.0
    %113 = vmatprep.subr.mxu0 0.0
    %114 = vmatpush1.msra.mxu0 0.0
    %115 = vmatprep.subr.mxu0 0.0
    %116 = vmatpush1.msra.mxu0 0.0
    %117 = vmatprep.subr.mxu0 0.0
    %118 = vmatpush1.msra.mxu0 0.0
    %119 = vmatprep.subr.mxu0 0.0
    %120 = vmatpush1.msra.mxu0 0.0
    %121 = vmatprep.subr.mxu0 0.0
    %122 = vmatpush1.msra.mxu0 0.0
    %123 = vmatprep.subr.mxu0 0.0
    %124 = vmatpush1.msra.mxu0 0.0
    %125 = vmatprep.subr.mxu0 0.0
    %126 = vmatpush1.msra.mxu0 0.0
    %127 = vmatprep.subr.mxu0 0.0
    %128 = vmatpush1.msra.mxu0 0.0
    %129 = vmatprep.subr.mxu0 0.0
    %130 = vmatpush1.msra.mxu0 0.0
    %131 = vmatprep.subr.mxu0 0.0
    %132 = vmatpush1.msra.mxu0 0.0
    %133 = vmatprep.subr.mxu0 0.0
    %134 = vmatpush1.msra.mxu0 0.0
    %135 = vmatprep.subr.mxu0 0.0
    %136 = vmatpush1.msra.mxu0 0.0
    %137 = vmatprep.subr.mxu0 0.0
    %138 = vmatpush1.msra.mxu0 0.0
    %139 = vmatprep.mubr.f32.mxu0 0.0
    %140 = vmatmul.mubr.f32.gmra.mrb[0].mxu0 %v70
    %v141 = vpop.f32.mrb[0].mxu0
    %v142 = vadd.f32 0.0, %v141
    %v143 = vpop.f32.mrb[0].mxu0
    %144 = vmatprep.mubr.f32.mxu0 0.0
    %145 = vmatmul.mubr.f32.gmra.mrb[0].mxu0 %v73
    %v146 = vpop.f32.mrb[0].mxu0
    %v147 = vadd.f32 0.0, %v146
    %v148 = vpop.f32.mrb[0].mxu0
    %149 = vdwg.mxu0
    %v150 = vld [vmem:[%s2] sm:$0xff]
    %v151 = vld [vmem:[%s2 + $0x8] sm:$0xff]
    %v152 = vld [vmem:[#allocation7] sm:$0xff]
    %v153 = vld [vmem:[#allocation7 + $0x8] sm:$0xff]
    %v154 = vld [vmem:[%s4] sm:$0x1]
    %v156 = vlaneseq
    %v157 = vshrl.u32 %v156, 7
    %v158 = vsub.s32 0, %v157
    %v159 = vrot.slane %v154, %v158
    %vm161 = vcmask 130048
    %v163 = vsel %vm161, %v150, 0
    %v166 = vsel %vm161, %v151, 0
    %168 = vmatprep.subr.mxu0 0.0
    %169 = vmatpush1.msra.mxu0 %v152
    %170 = vmatprep.subr.mxu0 0.0
    %171 = vmatpush1.msra.mxu0 %v153
    %172 = vmatprep.subr.mxu0 0.0
    %173 = vmatpush1.msra.mxu0 0.0
    %174 = vmatprep.subr.mxu0 0.0
    %175 = vmatpush1.msra.mxu0 0.0
    %176 = vmatprep.subr.mxu0 0.0
    %177 = vmatpush1.msra.mxu0 0.0
    %178 = vmatprep.subr.mxu0 0.0
    %179 = vmatpush1.msra.mxu0 0.0
    %180 = vmatprep.subr.mxu0 0.0
    %181 = vmatpush1.msra.mxu0 0.0
    %182 = vmatprep.subr.mxu0 0.0
    %183 = vmatpush1.msra.mxu0 0.0
    %184 = vmatprep.subr.mxu0 0.0
    %185 = vmatpush1.msra.mxu0 0.0
    %186 = vmatprep.subr.mxu0 0.0
    %187 = vmatpush1.msra.mxu0 0.0
    %188 = vmatprep.subr.mxu0 0.0
    %189 = vmatpush1.msra.mxu0 0.0
    %190 = vmatprep.subr.mxu0 0.0
    %191 = vmatpush1.msra.mxu0 0.0
    %192 = vmatprep.subr.mxu0 0.0
    %193 = vmatpush1.msra.mxu0 0.0
    %194 = vmatprep.subr.mxu0 0.0
    %195 = vmatpush1.msra.mxu0 0.0
    %196 = vmatprep.subr.mxu0 0.0
    %197 = vmatpush1.msra.mxu0 0.0
    %198 = vmatprep.subr.mxu0 0.0
    %199 = vmatpush1.msra.mxu0 0.0
    %200 = vmatprep.subr.mxu0 0.0
    %201 = vmatpush1.msra.mxu0 0.0
    %202 = vmatprep.subr.mxu0 0.0
    %203 = vmatpush1.msra.mxu0 0.0
    %204 = vmatprep.subr.mxu0 0.0
    %205 = vmatpush1.msra.mxu0 0.0
    %206 = vmatprep.subr.mxu0 0.0
    %207 = vmatpush1.msra.mxu0 0.0
    %208 = vmatprep.subr.mxu0 0.0
    %209 = vmatpush1.msra.mxu0 0.0
    %210 = vmatprep.subr.mxu0 0.0
    %211 = vmatpush1.msra.mxu0 0.0
    %212 = vmatprep.subr.mxu0 0.0
    %213 = vmatpush1.msra.mxu0 0.0
    %214 = vmatprep.subr.mxu0 0.0
    %215 = vmatpush1.msra.mxu0 0.0
    %216 = vmatprep.subr.mxu0 0.0
    %217 = vmatpush1.msra.mxu0 0.0
    %218 = vmatprep.subr.mxu0 0.0
    %219 = vmatpush1.msra.mxu0 0.0
    %220 = vmatprep.subr.mxu0 0.0
    %221 = vmatpush1.msra.mxu0 0.0
    %222 = vmatprep.subr.mxu0 0.0
    %223 = vmatpush1.msra.mxu0 0.0
    %224 = vmatprep.subr.mxu0 0.0
    %225 = vmatpush1.msra.mxu0 0.0
    %226 = vmatprep.subr.mxu0 0.0
    %227 = vmatpush1.msra.mxu0 0.0
    %228 = vmatprep.subr.mxu0 0.0
    %229 = vmatpush1.msra.mxu0 0.0
    %230 = vmatprep.subr.mxu0 0.0
    %231 = vmatpush1.msra.mxu0 0.0
    %232 = vmatprep.mubr.f32.mxu0 0.0
    %233 = vmatmul.mubr.f32.gmra.mrb[0].mxu0 %v163
    %v234 = vpop.f32.mrb[0].mxu0
    %v235 = vadd.f32 %v159, %v234
    %v236 = vpop.f32.mrb[0].mxu0
    %237 = vmatprep.mubr.f32.mxu0 0.0
    %238 = vmatmul.mubr.f32.gmra.mrb[0].mxu0 %v166
    %v239 = vpop.f32.mrb[0].mxu0
    %v240 = vadd.f32 %v159, %v239
    %v241 = vpop.f32.mrb[0].mxu0
    %242 = vdwg.mxu0
    %v243 = vxor.u32 %v235, 2147483648
    %v244 = vxor.u32 %v240, 2147483648
    %v245 = vmul.f32 %v243, 1.442695
    %v246 = vpow.pop %v245
    %v247 = vmul.f32 %v244, 1.442695
    %v248 = vpow.pop %v247
    %v249 = vadd.f32 %v246, 1.0
    %v250 = vadd.f32 %v248, 1.0
    %v251 = vrcp.pop %v249
    %v252 = vmul.f32 1.0, %v251
    %v253 = vrcp.pop %v250
    %v254 = vmul.f32 1.0, %v253
    %v255 = vmul.f32 %v252, %v142
    %v256 = vmul.f32 %v254, %v147
    %257 = vst.msk [vmem:[#allocation8] sm:$0xff] %vm68, %v255
    %258 = vst.msk [vmem:[#allocation8 + $0x8] sm:$0xff] %vm68, %v256
    // Predicated region
    $region34: #{adaln_zero_forward.1} parent=1 // pred_check
      _
    $region35: #{adaln_zero_forward.1} parent=1 // pred_check_branch
      %260 = sbr.rel (0) target = $region37
    $region36: #{adaln_zero_forward.1} parent=1 // pred_region
      %s262 = ssub.s32 256, 256
      %263 = vsyncadd [#allocation4], %s262
      %s264 = sshll.u32 [#allocation8], 4
      %s265 = int_to_ptr.vmem [resolvable:$true] %s264
      %270 = dma.vmem_to_hbm [thread:$0]  %s265, 256, %s5, [#allocation4], 128, 128, 8
    $region37: #{adaln_zero_forward.1} parent=1 // pred_fallthru
      _
    // Predicated region
    $region38: #{adaln_zero_forward.1} parent=1 // pred_check
      _
    $region39: #{adaln_zero_forward.1} parent=1 // pred_check_branch
      %272 = sbr.rel (0) target = $region41
    $region40: #{adaln_zero_forward.1} parent=1 // pred_region
      %273 = dma.done [#allocation4], 256
    $region41: #{adaln_zero_forward.1} parent=1 // pred_fallthru
      _
    %274 = vsyncpa [#allocation3], 1
    %275 = vsyncpa [#allocation6], 1
    %276 = vsyncpa [#allocation4], 1

</llo_original>
